<compile_context>
chip_gen: v6e
topology: v6e:2x2x1
jax: 0.10.0
libtpu: 0.0.40
codegen_flags: <defaults>
</compile_context>

<pallas_src>
import jax
import jax.numpy as jnp
from jax import lax
from jax.experimental import pallas as pl
from jax.experimental.pallas import tpu as pltpu

IN_F = 10
HID_F = 20
OUT_F = 10


def tiny_model_kernel(x_ref, w1_ref, w2_ref, b2_ref, oT_ref):
    # x_ref : (TB, IN_F)  natural PyTorch layout (no wrapper transpose).
    # w1_ref: (HID_F, IN_F) bf16, w2_ref: (OUT_F, HID_F) bf16 -- grid-invariant.
    # b2_ref: (OUT_F, 1) f32.
    # oT_ref: (OUT_F, TB)  lane-dense output (batch on lanes) -> unmasked stores.
    x = x_ref[...].astype(jnp.bfloat16)

    # linear1 (no bias) + ReLU, transposed: hT = W1 @ x^T  -> (HID_F, TB).
    # Contracting x's last axis folds the x-transpose into the MXU op.
    hT = lax.dot_general(
        w1_ref[...], x,
        dimension_numbers=(((1,), (1,)), ((), ())),
        preferred_element_type=jnp.float32,
    )
    hT = jnp.maximum(hT, 0.0)

    # linear2 (with bias), transposed: logitsT = W2 @ hT + b2  -> (OUT_F, TB).
    logitsT = jnp.dot(w2_ref[...], hT.astype(jnp.bfloat16),
                      preferred_element_type=jnp.float32)
    logitsT = logitsT + b2_ref[...]                      # (OUT_F, 1) broadcast over lanes

    # softmax over features (axis 0 here == dim=1 of the original (B, 10) layout)
    m = jnp.max(logitsT, axis=0, keepdims=True)
    e = jnp.exp(logitsT - m)
    denom = jnp.sum(e, axis=0, keepdims=True)
    inv = pl.reciprocal(denom, approx=True)              # EUP vrcp (idle slot)
    inv = inv * (2.0 - denom * inv)                      # one Newton step -> near-exact
    oT_ref[...] = (e * inv).astype(oT_ref.dtype)


def tiny_model_forward(x, w1, w2, b2, *, tm=16384, feature_major_output=False):
    """Fused forward pass.

    x : (B, 10) float32   -- natural PyTorch layout, consumed directly (no HBM transpose)
    w1: (20, 10)          -- Linear(10, 20, bias=False).weight
    w2: (10, 20)          -- Linear(20, 10).weight
    b2: (10,)             -- Linear(20, 10).bias
    Returns (B, 10) softmax probabilities, or the lane-dense (10, B) array if
    feature_major_output=True (zero extra HBM traffic for fused consumers).
    """
    B = x.shape[0]

    if B <= 128:
        # Single full-array block (block dims equal array dims -> always legal).
        tm_eff = B
    else:
        # Lane-aligned tile; cap so the grid has >= 2 steps (v7x megacore gets
        # both TensorCores busy) and clamp to the requested maximum.
        two_core_cap = pl.cdiv(B, 2 * 128) * 128
        tm_eff = max(128, min(tm, two_core_cap))

    grid = (pl.cdiv(B, tm_eff),)

    # Tiny, grid-invariant weights: cast once to bf16 so both MXU ops take bf16
    # operands (f32 accumulation via preferred_element_type).
    w1_bf = w1.astype(jnp.bfloat16)
    w2_bf = w2.astype(jnp.bfloat16)
    b2_col = b2.reshape(OUT_F, 1).astype(jnp.float32)

    cost = pl.CostEstimate(
        flops=2 * B * (IN_F * HID_F + HID_F * OUT_F),
        transcendentals=B * (OUT_F + 1),
        bytes_accessed=4 * B * (IN_F + OUT_F)
        + 2 * (HID_F * IN_F + OUT_F * HID_F) + 4 * OUT_F,
    )

    outT = pl.pallas_call(
        tiny_model_kernel,
        out_shape=jax.ShapeDtypeStruct((OUT_F, B), jnp.float32),
        grid=grid,
        in_specs=[
            pl.BlockSpec((tm_eff, IN_F), lambda i: (i, 0)),    # streamed natural x tiles
            pl.BlockSpec((HID_F, IN_F), lambda i: (0, 0)),     # resident weights
            pl.BlockSpec((OUT_F, HID_F), lambda i: (0, 0)),
            pl.BlockSpec((OUT_F, 1), lambda i: (0, 0)),        # resident bias
        ],
        out_specs=pl.BlockSpec((OUT_F, tm_eff), lambda i: (0, i)),  # lane-dense output
        compiler_params=pltpu.CompilerParams(
            # batch tiles are independent -> megacore-shardable (2 TCs on v7x)
            dimension_semantics=("parallel",),
            # headroom for double-buffered (tm, 10) tiles (narrow minor dim gets
            # lane-padded in VMEM); still well inside v7x's 64 MiB physical VMEM.
            vmem_limit_bytes=40 * 1024 * 1024,
        ),
        cost_estimate=cost,
    )(x, w1_bf, w2_bf, b2_col)

    if feature_major_output:
        return outT                      # (10, B), lane-dense, no extra HBM pass
    return jnp.transpose(outT)           # (B, 10) to match the PyTorch module


def init_params(key):
    """Deterministic params in native PyTorch Linear shapes."""
    k1, k2, k3 = jax.random.split(key, 3)
    w1 = jax.random.uniform(k1, (HID_F, IN_F), jnp.float32, -0.3, 0.3)   # Linear(10,20,bias=False).weight
    w2 = jax.random.uniform(k2, (OUT_F, HID_F), jnp.float32, -0.2, 0.2)  # Linear(20,10).weight
    b2 = jax.random.uniform(k3, (OUT_F,), jnp.float32, -0.2, 0.2)        # Linear(20,10).bias
    return w1, w2, b2


def reference_forward(x, w1, w2, b2):
    """Pure-JAX reference mirroring the PyTorch module exactly (f32 everywhere)."""
    h = jnp.maximum(x @ w1.T, 0.0)
    logits = h @ w2.T + b2
    return jax.nn.softmax(logits, axis=1)


if __name__ == "__main__":
    key = jax.random.PRNGKey(0)
    kx, kp = jax.random.split(key)

    batch = 8
    x = jax.random.normal(kx, (batch, IN_F), jnp.float32)
    w1, w2, b2 = init_params(kp)

    out = tiny_model_forward(x, w1, w2, b2)
    out = jax.block_until_ready(out)

    ref = reference_forward(x, w1, w2, b2)
    assert out.shape == (batch, OUT_F), out.shape
    # bf16 MXU operands -> relaxed tolerance vs the f32 reference.
    assert jnp.allclose(out, ref, atol=1e-2, rtol=1e-2), "mismatch vs reference"
    assert jnp.allclose(jnp.sum(out, axis=1), 1.0, atol=1e-4), "softmax rows must sum to 1"

    print("KERNEL_OK")
</pallas_src>

<mosaic_0001>
module attributes {stable_mosaic.version = 11 : i64} {
  func.func @tiny_model_kernel(%arg0: i32, %arg1: memref<8x10xf32, #tpu.memory_space<vmem>>, %arg2: memref<20x10xbf16, #tpu.memory_space<vmem>>, %arg3: memref<10x20xbf16, #tpu.memory_space<vmem>>, %arg4: memref<10x1xf32, #tpu.memory_space<vmem>>, %arg5: memref<10x8xf32, #tpu.memory_space<vmem>>) attributes {dimension_semantics = [#tpu.dimension_semantics<parallel>], iteration_bounds = array<i64: 1>, scalar_prefetch = 0 : i64, scratch_operands = 0 : i64, tpu.core_type = #tpu.core_type<tc>, window_params = [{transform_indices = @transform_0, window_bounds = array<i64: 8, 10>}, {pipeline_mode = #tpu.pipeline_mode<synchronous>, transform_indices = @transform_1, window_bounds = array<i64: 20, 10>}, {pipeline_mode = #tpu.pipeline_mode<synchronous>, transform_indices = @transform_2, window_bounds = array<i64: 10, 20>}, {pipeline_mode = #tpu.pipeline_mode<synchronous>, transform_indices = @transform_3, window_bounds = array<i64: 10, 1>}, {transform_indices = @transform_4, window_bounds = array<i64: 10, 8>}]} {
    %c0 = arith.constant 0 : index
    %c0_0 = arith.constant 0 : index
    %0 = vector.load %arg1[%c0, %c0_0] : memref<8x10xf32, #tpu.memory_space<vmem>>, vector<8x10xf32>
    %1 = arith.truncf %0 : vector<8x10xf32> to vector<8x10xbf16>
    %c0_1 = arith.constant 0 : index
    %c0_2 = arith.constant 0 : index
    %2 = vector.load %arg2[%c0_1, %c0_2] : memref<20x10xbf16, #tpu.memory_space<vmem>>, vector<20x10xbf16>
    %cst = arith.constant dense<0.000000e+00> : vector<20x8xf32>
    %3 = tpu.matmul %2, %1, %cst {dimension_numbers = #tpu.dot_dimension_numbers<[1], [1], [0], [0], [0, 0, 1, 0], [], []>} : vector<20x10xbf16>, vector<8x10xbf16>, vector<20x8xf32> -> vector<20x8xf32>
    %cst_3 = arith.constant 0.000000e+00 : f32
    %4 = vector.broadcast %cst_3 : f32 to vector<20x8xf32>
    %5 = arith.maximumf %3, %4 : vector<20x8xf32>
    %c0_4 = arith.constant 0 : index
    %c0_5 = arith.constant 0 : index
    %6 = vector.load %arg3[%c0_4, %c0_5] : memref<10x20xbf16, #tpu.memory_space<vmem>>, vector<10x20xbf16>
    %7 = arith.truncf %5 : vector<20x8xf32> to vector<20x8xbf16>
    %cst_6 = arith.constant dense<0.000000e+00> : vector<10x8xf32>
    %8 = tpu.matmul %6, %7, %cst_6 {dimension_numbers = #tpu.dot_dimension_numbers<[1], [0], [0], [1], [0, 0, 1, 1], [], []>} : vector<10x20xbf16>, vector<20x8xbf16>, vector<10x8xf32> -> vector<10x8xf32>
    %c0_7 = arith.constant 0 : index
    %c0_8 = arith.constant 0 : index
    %9 = vector.load %arg4[%c0_7, %c0_8] : memref<10x1xf32, #tpu.memory_space<vmem>>, vector<10x1xf32>
    %10 = vector.broadcast %9 : vector<10x1xf32> to vector<10x8xf32>
    %11 = arith.addf %8, %10 : vector<10x8xf32>
    %cst_9 = arith.constant dense<0xFF800000> : vector<8xf32>
    %12 = vector.multi_reduction <maximumf>, %11, %cst_9 [0] : vector<10x8xf32> to vector<8xf32>
    %13 = vector.shape_cast %12 : vector<8xf32> to vector<1x8xf32>
    %14 = vector.broadcast %13 : vector<1x8xf32> to vector<10x8xf32>
    %15 = arith.subf %11, %14 : vector<10x8xf32>
    %16 = math.exp %15 : vector<10x8xf32>
    %cst_10 = arith.constant dense<0.000000e+00> : vector<8xf32>
    %17 = vector.multi_reduction <add>, %16, %cst_10 [0] : vector<10x8xf32> to vector<8xf32>
    %18 = vector.shape_cast %17 : vector<8xf32> to vector<1x8xf32>
    %19 = tpu.reciprocal %18 {approx = true} : vector<1x8xf32> -> vector<1x8xf32>
    %20 = arith.mulf %18, %19 : vector<1x8xf32>
    %cst_11 = arith.constant 2.000000e+00 : f32
    %21 = vector.broadcast %cst_11 : f32 to vector<1x8xf32>
    %22 = arith.subf %21, %20 : vector<1x8xf32>
    %23 = arith.mulf %19, %22 : vector<1x8xf32>
    %24 = vector.broadcast %23 : vector<1x8xf32> to vector<10x8xf32>
    %25 = arith.mulf %16, %24 : vector<10x8xf32>
    %c0_12 = arith.constant 0 : index
    %c0_13 = arith.constant 0 : index
    %26 = vector.load %arg5[%c0_12, %c0_13] : memref<10x8xf32, #tpu.memory_space<vmem>>, vector<10x8xf32>
    tpu.vector_store %arg5[%c0_12, %c0_13], %25 {strides = array<i32>} : memref<10x8xf32, #tpu.memory_space<vmem>>, vector<10x8xf32>,
    return
  }
  func.func @transform_0(%arg0: i32) -> (i32, i32) {
    %c0_i32 = arith.constant 0 : i32
    %c0_i32_0 = arith.constant 0 : i32
    return %arg0, %c0_i32 : i32, i32
  }
  func.func @transform_1(%arg0: i32) -> (i32, i32) {
    %c0_i32 = arith.constant 0 : i32
    %c0_i32_0 = arith.constant 0 : i32
    %c0_i32_1 = arith.constant 0 : i32
    return %c0_i32, %c0_i32_0 : i32, i32
  }
  func.func @transform_2(%arg0: i32) -> (i32, i32) {
    %c0_i32 = arith.constant 0 : i32
    %c0_i32_0 = arith.constant 0 : i32
    %c0_i32_1 = arith.constant 0 : i32
    return %c0_i32, %c0_i32_0 : i32, i32
  }
  func.func @transform_3(%arg0: i32) -> (i32, i32) {
    %c0_i32 = arith.constant 0 : i32
    %c0_i32_0 = arith.constant 0 : i32
    %c0_i32_1 = arith.constant 0 : i32
    return %c0_i32, %c0_i32_0 : i32, i32
  }
  func.func @transform_4(%arg0: i32) -> (i32, i32) {
    %c0_i32 = arith.constant 0 : i32
    %c0_i32_0 = arith.constant 0 : i32
    return %c0_i32, %arg0 : i32, i32
  }
}

</mosaic_0001>

<llo_original>
// kernel: tpu_custom_call.1
$region0: #{tpu_custom_call.1}
  #allocation0 [shape = 'u32[]', space=smem, size = 0x4, offset = 0x4, fixed_abs, tag = 'smem constant byte address 0x4 - core index']
  #allocation1 [shape = 'u32[144,128]{1,0:T(1,128)}', space=vmem, size = 0x12000, scoped, tag = 'internal scratch']
  %s0 = inlined_call_operand.vmem [shape: f32[8,10], index: 0, kind: input, shape index: {}]
  %s1 = inlined_call_operand.vmem [shape: bf16[20,10], index: 1, kind: input, shape index: {}]
  %s2 = inlined_call_operand.vmem [shape: bf16[10,20], index: 2, kind: input, shape index: {}]
  %s3 = inlined_call_operand.vmem [shape: f32[10,1], index: 3, kind: input, shape index: {}]
  %s4 = inlined_call_operand.vmem [shape: f32[10,8], index: 4, kind: output, shape index: {}]
  %s5 = sld [smem:[#allocation0]]
  $region26: #{tpu_custom_call.1} parent=0
    _
  %s7 = ssub.s32 1, %s5
  %s8 = scalar_select 0, %s7, %s5
  // Predicated region
  $region2: #{tpu_custom_call.1} parent=0 // pred_check
    _
  $region3: #{tpu_custom_call.1} parent=0 // pred_check_branch
    %10 = sbr.rel (0) target = $region5
  $region4: #{tpu_custom_call.1} parent=0 // pred_region
    _
  $region5: #{tpu_custom_call.1} parent=0 // pred_fallthru
    _
  // Predicated region
  $region6: #{tpu_custom_call.1} parent=0 // pred_check
    _
  $region7: #{tpu_custom_call.1} parent=0 // pred_check_branch
    %12 = sbr.rel (0) target = $region9
  $region8: #{tpu_custom_call.1} parent=0 // pred_region
    _
  $region9: #{tpu_custom_call.1} parent=0 // pred_fallthru
    _
  // Predicated region
  $region10: #{tpu_custom_call.1} parent=0 // pred_check
    _
  $region11: #{tpu_custom_call.1} parent=0 // pred_check_branch
    %14 = sbr.rel (0) target = $region13
  $region12: #{tpu_custom_call.1} parent=0 // pred_region
    _
  $region13: #{tpu_custom_call.1} parent=0 // pred_fallthru
    _
  // Predicated region
  $region14: #{tpu_custom_call.1} parent=0 // pred_check
    _
  $region15: #{tpu_custom_call.1} parent=0 // pred_check_branch
    %16 = sbr.rel (0) target = $region17
  $region16: #{tpu_custom_call.1} parent=0 // pred_region
    _
  $region17: #{tpu_custom_call.1} parent=0 // pred_fallthru
    _
  %v18 = vld [vmem:[%s0] sm:$0xff]
  %v19 = vpack.c.bf16 %v18, %v18
  %v20 = vld [vmem:[%s1] sm:$0xf]
  %v21 = vld [vmem:[%s1 + $0x4] sm:$0xf]
  %v22 = vld [vmem:[%s1 + $0x8] sm:$0x3]
  %v26 = vunpack.c.l.b16 %v20
  %v27 = vunpack.c.l.b16 %v21
  %v28 = vunpack.c.l.b16 %v22
  %v29 = vpack.c.b16 %v27, %v26
  %v30 = vpack.c.b16 %v28, %v28
  %vm31 = vcmask 80896
  %v33 = vsel %vm31, %v29, 0
  %v36 = vsel %vm31, %v30, 0
  %v39 = vsel %vm31, %v19, 0
  %41 = vmatprep.subr.bf16.mxu0 0
  %42 = vmatpush1.bf16.xpose.msra.mxu0 0
  %43 = vmatprep.subr.bf16.mxu0 0
  %44 = vmatpush1.bf16.xpose.msra.mxu0 0
  %45 = vmatprep.subr.bf16.mxu0 0
  %46 = vmatpush1.bf16.xpose.msra.mxu0 0
  %47 = vmatprep.subr.bf16.mxu0 0
  %48 = vmatpush1.bf16.xpose.msra.mxu0 0
  %49 = vmatprep.subr.bf16.mxu0 0
  %50 = vmatpush1.bf16.xpose.msra.mxu0 0
  %51 = vmatprep.subr.bf16.mxu0 0
  %52 = vmatpush1.bf16.xpose.msra.mxu0 0
  %53 = vmatprep.subr.bf16.mxu0 0
  %54 = vmatpush1.bf16.xpose.msra.mxu0 0
  %55 = vmatprep.subr.bf16.mxu0 0
  %56 = vmatpush1.bf16.xpose.msra.mxu0 %v39
  %57 = vmatprep.subr.bf16.mxu0 0
  %58 = vmatpush2.bf16.xpose.msra.mxu0 0
  %59 = vmatprep.subr.bf16.mxu0 0
  %60 = vmatpush2.bf16.xpose.msra.mxu0 0
  %61 = vmatprep.subr.bf16.mxu0 0
  %62 = vmatpush2.bf16.xpose.msra.mxu0 0
  %63 = vmatprep.subr.bf16.mxu0 0
  %64 = vmatpush2.bf16.xpose.msra.mxu0 0
  %65 = vmatprep.subr.bf16.mxu0 0
  %66 = vmatpush2.bf16.xpose.msra.mxu0 0
  %67 = vmatprep.subr.bf16.mxu0 0
  %68 = vmatpush2.bf16.xpose.msra.mxu0 0
  %69 = vmatprep.subr.bf16.mxu0 0
  %70 = vmatpush2.bf16.xpose.msra.mxu0 0
  %71 = vmatprep.subr.bf16.mxu0 0
  %72 = vmatpush2.bf16.xpose.msra.mxu0 0
  %73 = vmatprep.mubr.bf16.mxu0 0
  %74 = vmatmul.mubr.bf16.gmra.mxu0 %v33
  %v75 = vpop.f32.mrf.mxu0
  %v76 = vadd.f32 0.0, %v75
  %v77 = vpop.f32.mrf.mxu0
  %v78 = vpop.f32.mrf.mxu0
  %v79 = vadd.f32 0.0, %v78
  %v80 = vpop.f32.mrf.mxu0
  %81 = vmatprep.mubr.bf16.mxu0 0
  %82 = vmatmul.mubr.bf16.gmra.mxu0 %v36
  %v83 = vpop.f32.mrf.mxu0
  %v84 = vadd.f32 0.0, %v83
  %v85 = vpop.f32.mrf.mxu0
  %v86 = vpop.f32.mrf.mxu0
  %v87 = vpop.f32.mrf.mxu0
  %88 = vdwg.mxu0
  %v89 = vmax.f32 %v76, 0.0
  %v90 = vmax.f32 %v79, 0.0
  %v91 = vmax.f32 %v84, 0.0
  %v92 = vld [vmem:[%s2] sm:$0xf]
  %v93 = vld [vmem:[%s2 + $0x4] sm:$0x1]
  %v94 = vpack.c.bf16 %v90, %v89
  %v95 = vpack.c.bf16 %v91, %v91
  %v96 = vld [vmem:[%s3] sm:$0xff]
  %v97 = vld [vmem:[%s3 + $0x8] sm:$0x3]
  %99 = vset.pattern.permute.xlu0 0
  %100 = vperm.xlu0 %99, %v96
  %v101 = vpop.permute.xlu0 %100
  %104 = vset.pattern.permute.xlu0 0
  %105 = vperm.xlu0 %104, %v97
  %v106 = vpop.permute.xlu0 %105
  %v110 = vunpack.c.l.b16 %v92
  %v111 = vunpack.c.l.b16 %v93
  %v112 = vpack.c.b16 %v111, %v110
  %vm113 = vcmask 162816
  %v115 = vsel %vm113, %v112, 0
  %vm117 = vcmask 1041408
  %v119 = vsel %vm117, %v95, 0
  %121 = vmatprep.subr.bf16.mxu0 0
  %122 = vmatpush1.bf16.msra.mxu0 0
  %123 = vmatprep.subr.bf16.mxu0 0
  %124 = vmatpush1.bf16.msra.mxu0 0
  %125 = vmatprep.subr.bf16.mxu0 0
  %126 = vmatpush1.bf16.msra.mxu0 0
  %127 = vmatprep.subr.bf16.mxu0 0
  %128 = vmatpush1.bf16.msra.mxu0 0
  %129 = vmatprep.subr.bf16.mxu0 0
  %130 = vmatpush1.bf16.msra.mxu0 0
  %131 = vmatprep.subr.bf16.mxu0 0
  %132 = vmatpush1.bf16.msra.mxu0 0
  %133 = vmatprep.subr.bf16.mxu0 0
  %134 = vmatpush1.bf16.msra.mxu0 %v119
  %135 = vmatprep.subr.bf16.mxu0 0
  %136 = vmatpush1.bf16.msra.mxu0 %v94
  %137 = vmatprep.subr.bf16.mxu0 0
  %138 = vmatpush2.bf16.msra.mxu0 0
  %139 = vmatprep.subr.bf16.mxu0 0
  %140 = vmatpush2.bf16.msra.mxu0 0
  %141 = vmatprep.subr.bf16.mxu0 0
  %142 = vmatpush2.bf16.msra.mxu0 0
  %143 = vmatprep.subr.bf16.mxu0 0
  %144 = vmatpush2.bf16.msra.mxu0 0
  %145 = vmatprep.subr.bf16.mxu0 0
  %146 = vmatpush2.bf16.msra.mxu0 0
  %147 = vmatprep.subr.bf16.mxu0 0
  %148 = vmatpush2.bf16.msra.mxu0 0
  %149 = vmatprep.subr.bf16.mxu0 0
  %150 = vmatpush2.bf16.msra.mxu0 0
  %151 = vmatprep.subr.bf16.mxu0 0
  %152 = vmatpush2.bf16.msra.mxu0 0
  %153 = vmatprep.mubr.bf16.mxu0 0
  %154 = vmatmul.mubr.bf16.gmra.mxu0 %v115
  %v155 = vpop.f32.mrf.mxu0
  %v156 = vadd.f32 %v101, %v155
  %v157 = vpop.f32.mrf.mxu0
  %v158 = vpop.f32.mrf.mxu0
  %v159 = vadd.f32 %v106, %v158
  %v160 = vpop.f32.mrf.mxu0
  %161 = vdwg.mxu0
  %vm162 = vcmask 64512
  %v163 = vsel %vm162, %v156, -inf
  %vm164 = vcmask 58368
  %v165 = vsel %vm164, %v159, -inf
  %v166 = vmax.f32 %v163, %v165
  %v167 = vrot.slane %v166, 4
  %v168 = vmax.f32 %v166, %v167
  %v169 = vrot.slane %v168, 2
  %v170 = vmax.f32 %v168, %v169
  %v171 = vrot.slane %v170, 1
  %v172 = vmax.f32 %v170, %v171
  %v173 = vsub.f32 %v156, %v172
  %v174 = vsub.f32 %v159, %v172
  %v175 = vmul.f32 %v173, 1.442695
  %v176 = vpow.pop %v175
  %v177 = vmul.f32 %v174, 1.442695
  %v178 = vpow.pop %v177
  %v179 = vsel %vm162, %v176, 0.0
  %v180 = vsel %vm164, %v178, 0.0
  %v181 = vadd.f32 %v179, %v180
  %v182 = vrot.slane %v181, 4
  %v183 = vadd.f32 %v181, %v182
  %v184 = vrot.slane %v183, 2
  %v185 = vadd.f32 %v183, %v184
  %v186 = vrot.slane %v185, 1
  %v187 = vadd.f32 %v185, %v186
  %v188 = vrcp.pop %v187
  %v189 = vmul.f32 %v187, %v188
  %v190 = vsub.f32 2.0, %v189
  %v191 = vmul.f32 %v188, %v190
  %v192 = vmul.f32 %v176, %v191
  %v193 = vmul.f32 %v178, %v191
  %194 = vst.msk [vmem:[%s4] sm:$0xff] %vm162, %v192
  %195 = vst.msk [vmem:[%s4 + $0x8] sm:$0x3] %vm164, %v193
  // Predicated region
  $region18: #{tpu_custom_call.1} parent=0 // pred_check
    _
  $region19: #{tpu_custom_call.1} parent=0 // pred_check_branch
    %197 = sbr.rel (0) target = $region21
  $region20: #{tpu_custom_call.1} parent=0 // pred_region
    _
  $region21: #{tpu_custom_call.1} parent=0 // pred_fallthru
    _
  // Predicated region
  $region22: #{tpu_custom_call.1} parent=0 // pred_check
    _
  $region23: #{tpu_custom_call.1} parent=0 // pred_check_branch
    %199 = sbr.rel (0) target = $region25
  $region24: #{tpu_custom_call.1} parent=0 // pred_region
    _
  $region25: #{tpu_custom_call.1} parent=0 // pred_fallthru
    _

</llo_original>
